<compile_context>
chip_gen: v7x
topology: tpu7x:2x2x1
jax: 0.10.0
libtpu: 0.0.40
codegen_flags: <defaults>
</compile_context>

<pallas_src>
import jax
import jax.numpy as jnp
from jax.experimental import pallas as pl
from jax.experimental.pallas import tpu as pltpu


_TILE_BUDGET_BYTES = 2 * 1024 * 1024    # per x-tile; ~4x when double-buffered (in+out)
_VMEM_LIMIT_BYTES = 32 * 1024 * 1024    # explicit scoped-VMEM budget, safe on v5e/v6e/v7x


def _scale_mul_kernel(x_ref, scale_ref, o_ref):
    # (tile_rows, tile_cols) * broadcastable scale block — pure VPU streaming op.
    # scale block is either (tile_rows, 1) (lane broadcast) or (1, tile_cols)
    # (sublane broadcast); both lower to cheap VPU broadcasts.
    o_ref[...] = x_ref[...] * scale_ref[...]


def _scalar_scale_kernel(scale_ref, x_ref, o_ref):
    # scale_ref is a (1,) f32 scalar living in SMEM (constant over the tensor).
    o_ref[...] = x_ref[...] * scale_ref[0].astype(x_ref.dtype)


def _choose_tiles(rows, cols, itemsize):
    """VMEM-budgeted, dtype-aware (sublane x lane) tile sizes."""
    sublane = max(8, 32 // itemsize)           # 8 (f32), 16 (bf16), 32 (int8/fp8)
    budget_elems = max(_TILE_BUDGET_BYTES // itemsize, sublane * 128)

    # Tile columns only when cols is lane-aligned and even one sublane-group of
    # full-width rows would blow the budget (very large feature maps).
    if cols % 128 == 0 and cols * sublane > budget_elems:
        tile_cols = max(128, ((budget_elems // sublane) // 128) * 128)
        tile_cols = min(tile_cols, cols)
    else:
        tile_cols = cols

    tile_rows = max(sublane, ((budget_elems // tile_cols) // sublane) * sublane)
    if tile_rows >= rows:
        tile_rows = rows                       # full-dim block is always legal
    return tile_rows, tile_cols


def _lane_dense_cols(total, max_cols=16384):
    """Largest multiple-of-128 divisor of `total` (capped), or 0 if none."""
    best = 0
    c = 128
    limit = min(total, max_cols)
    while c <= limit:
        if total % c == 0:
            best = c
        c += 128
    return best


def _scale_2d_pallas(x2d, scale2d):
    """out = x2d * scale2d, scale2d is (rows, 1) or (1, cols), broadcast in-kernel."""
    rows, cols = x2d.shape
    itemsize = jnp.dtype(x2d.dtype).itemsize
    tile_rows, tile_cols = _choose_tiles(rows, cols, itemsize)
    grid = (pl.cdiv(rows, tile_rows), pl.cdiv(cols, tile_cols))

    if scale2d.shape[0] == 1:                       # per-column scale row
        scale_spec = pl.BlockSpec((1, tile_cols), lambda i, j: (0, j))
    else:                                           # per-row scale column
        scale_spec = pl.BlockSpec((tile_rows, 1), lambda i, j: (i, 0))

    cost = pl.CostEstimate(
        flops=int(rows) * int(cols),
        transcendentals=0,
        bytes_accessed=2 * int(rows) * int(cols) * itemsize
        + int(scale2d.size) * jnp.dtype(scale2d.dtype).itemsize,
    )
    return pl.pallas_call(
        _scale_mul_kernel,
        out_shape=jax.ShapeDtypeStruct((rows, cols), x2d.dtype),
        grid=grid,
        in_specs=[
            pl.BlockSpec((tile_rows, tile_cols), lambda i, j: (i, j)),
            scale_spec,
        ],
        out_specs=pl.BlockSpec((tile_rows, tile_cols), lambda i, j: (i, j)),
        compiler_params=pltpu.CompilerParams(
            dimension_semantics=("parallel", "parallel"),
            vmem_limit_bytes=_VMEM_LIMIT_BYTES,
        ),
        cost_estimate=cost,
    )(x2d, scale2d)


def _scalar_scale_pallas(x2d, scale1):
    """out = x2d * scale1[0], scalar held in SMEM."""
    rows, cols = x2d.shape
    itemsize = jnp.dtype(x2d.dtype).itemsize
    tile_rows, tile_cols = _choose_tiles(rows, cols, itemsize)
    grid = (pl.cdiv(rows, tile_rows), pl.cdiv(cols, tile_cols))
    cost = pl.CostEstimate(
        flops=int(rows) * int(cols),
        transcendentals=0,
        bytes_accessed=2 * int(rows) * int(cols) * itemsize,
    )
    return pl.pallas_call(
        _scalar_scale_kernel,
        out_shape=jax.ShapeDtypeStruct((rows, cols), x2d.dtype),
        grid=grid,
        in_specs=[
            pl.BlockSpec(memory_space=pltpu.MemorySpace.SMEM),
            pl.BlockSpec((tile_rows, tile_cols), lambda i, j: (i, j)),
        ],
        out_specs=pl.BlockSpec((tile_rows, tile_cols), lambda i, j: (i, j)),
        compiler_params=pltpu.CompilerParams(
            dimension_semantics=("parallel", "parallel"),
            vmem_limit_bytes=_VMEM_LIMIT_BYTES,
        ),
        cost_estimate=cost,
    )(scale1, x2d)


def drop_path(x, key, drop_prob: float, mode: str, training: bool = True):
    """JAX/Pallas equivalent of DropPath.forward (stochastic_depth)."""
    if drop_prob < 0.0 or drop_prob > 1.0:
        raise ValueError(
            f"drop probability has to be between 0 and 1, but got {drop_prob}")
    if mode not in ("batch", "row"):
        raise ValueError(f"mode has to be either 'batch' or 'row', but got {mode}")
    if not training or drop_prob == 0.0:
        return x

    N, C, H, W = x.shape
    survival_rate = 1.0 - drop_prob
    hw = H * W

    if mode == "batch":
        keep = jax.random.bernoulli(key, survival_rate, (1,)).astype(jnp.float32)
        scale = keep / survival_rate if survival_rate > 0.0 else keep
        total = N * C * hw
        cols = _lane_dense_cols(total)
        if cols:
            # Lane-dense flattening: last dim is a multiple of 128 -> unmasked vst.
            x2d = x.reshape(total // cols, cols)
        else:
            # TODO(synk): a pad-to-128 repack would recover unmasked stores here.
            x2d = x.reshape(N * C, hw)
        out2d = _scalar_scale_pallas(x2d, scale)
        return out2d.reshape(N, C, H, W)

    # mode == 'row': per-channel noise [1, C, 1, 1] shared across the batch.
    keep = jax.random.bernoulli(key, survival_rate, (C,)).astype(jnp.float32)
    scale_c = keep / survival_rate if survival_rate > 0.0 else keep
    scale_c = scale_c.astype(x.dtype)                # scale computed in f32, cast once

    if hw % 128 == 0 or (C * hw) % 128 != 0:
        # Standard layout: (N*C, H*W) with a per-row scale column.
        x2d = x.reshape(N * C, hw)
        scale2d = jnp.broadcast_to(scale_c[None, :], (N, C)).reshape(N * C, 1)
    else:
        # Lane-dense fold: H*W is not 128-aligned but C*H*W is.  Fold the
        # channel axis into the lane axis and expand the per-channel scale to a
        # per-column row (tiny: C*H*W elements, re-read once per N row-tile).
        x2d = x.reshape(N, C * hw)
        scale2d = jnp.repeat(scale_c, hw).reshape(1, C * hw)
    out2d = _scale_2d_pallas(x2d, scale2d)
    return out2d.reshape(N, C, H, W)


if __name__ == "__main__":
    key = jax.random.PRNGKey(0)
    kx, knoise = jax.random.split(key)

    N, C, H, W = 2, 4, 16, 16
    x = jax.random.normal(kx, (N, C, H, W), dtype=jnp.float32)

    drop_prob = 0.25
    survival = 1.0 - drop_prob

    # --- 'row' mode (per-channel noise shared across the batch) ---
    out_row = jax.block_until_ready(
        drop_path(x, knoise, drop_prob, "row", training=True))
    keep_c = jax.random.bernoulli(knoise, survival, (C,)).astype(jnp.float32) / survival
    ref_row = x * keep_c.astype(x.dtype).reshape(1, C, 1, 1)
    assert out_row.shape == x.shape and out_row.dtype == x.dtype
    assert jnp.allclose(out_row, ref_row, atol=1e-6, rtol=1e-6)

    # --- 'row' mode with a non-lane-aligned H*W (exercises the lane-dense fold) ---
    H2, W2 = 12, 8                                  # H*W = 96, C*H*W = 384 (128-aligned)
    x2 = jax.random.normal(kx, (N, C, H2, W2), dtype=jnp.float32)
    out_row2 = jax.block_until_ready(
        drop_path(x2, knoise, drop_prob, "row", training=True))
    ref_row2 = x2 * keep_c.astype(x2.dtype).reshape(1, C, 1, 1)
    assert jnp.allclose(out_row2, ref_row2, atol=1e-6, rtol=1e-6)

    # --- 'batch' mode (single scalar noise) ---
    out_b = jax.block_until_ready(
        drop_path(x, knoise, drop_prob, "batch", training=True))
    keep_b = jax.random.bernoulli(knoise, survival, (1,)).astype(jnp.float32) / survival
    ref_b = x * keep_b.astype(x.dtype).reshape(1, 1, 1, 1)
    assert jnp.allclose(out_b, ref_b, atol=1e-6, rtol=1e-6)

    # --- eval / p==0 identity paths ---
    out_eval = drop_path(x, knoise, drop_prob, "row", training=False)
    assert jnp.allclose(out_eval, x)
    out_p0 = drop_path(x, knoise, 0.0, "row", training=True)
    assert jnp.allclose(out_p0, x)

    print("KERNEL_OK")
</pallas_src>

<mosaic_0001>
module attributes {stable_mosaic.version = 11 : i64} {
  func.func @_scale_mul_kernel(%arg0: i32, %arg1: i32, %arg2: memref<8x256xf32, #tpu.memory_space<vmem>>, %arg3: memref<8x1xf32, #tpu.memory_space<vmem>>, %arg4: memref<8x256xf32, #tpu.memory_space<vmem>>) attributes {dimension_semantics = [#tpu.dimension_semantics<parallel>, #tpu.dimension_semantics<parallel>], iteration_bounds = array<i64: 1, 1>, scalar_prefetch = 0 : i64, scratch_operands = 0 : i64, tpu.core_type = #tpu.core_type<tc>, window_params = [{transform_indices = @transform_0, window_bounds = array<i64: 8, 256>}, {transform_indices = @transform_1, window_bounds = array<i64: 8, 1>}, {transform_indices = @transform_2, window_bounds = array<i64: 8, 256>}]} {
    %c0 = arith.constant 0 : index
    %c0_0 = arith.constant 0 : index
    %0 = vector.load %arg2[%c0, %c0_0] : memref<8x256xf32, #tpu.memory_space<vmem>>, vector<8x256xf32>
    %c0_1 = arith.constant 0 : index
    %c0_2 = arith.constant 0 : index
    %1 = vector.load %arg3[%c0_1, %c0_2] : memref<8x1xf32, #tpu.memory_space<vmem>>, vector<8x1xf32>
    %2 = vector.broadcast %1 : vector<8x1xf32> to vector<8x256xf32>
    %3 = arith.mulf %0, %2 : vector<8x256xf32>
    %c0_3 = arith.constant 0 : index
    %c0_4 = arith.constant 0 : index
    %4 = vector.load %arg4[%c0_3, %c0_4] : memref<8x256xf32, #tpu.memory_space<vmem>>, vector<8x256xf32>
    tpu.vector_store %arg4[%c0_3, %c0_4], %3 {strides = array<i32>} : memref<8x256xf32, #tpu.memory_space<vmem>>, vector<8x256xf32>,
    return
  }
  func.func @transform_0(%arg0: i32, %arg1: i32) -> (i32, i32) {
    %c0_i32 = arith.constant 0 : i32
    return %arg0, %arg1 : i32, i32
  }
  func.func @transform_1(%arg0: i32, %arg1: i32) -> (i32, i32) {
    %c0_i32 = arith.constant 0 : i32
    %c0_i32_0 = arith.constant 0 : i32
    return %arg0, %c0_i32 : i32, i32
  }
  func.func @transform_2(%arg0: i32, %arg1: i32) -> (i32, i32) {
    %c0_i32 = arith.constant 0 : i32
    return %arg0, %arg1 : i32, i32
  }
}

</mosaic_0001>

<llo_original>
// kernel: tpu_custom_call.1
$region0: #{tpu_custom_call.1}
  #allocation0 [shape = 'u32[]', space=smem, size = 0x4, offset = 0x4, fixed_abs, tag = 'smem constant byte address 0x4 - core index']
  #allocation1 [shape = 'u32[144,128]{1,0:T(1,128)}', space=vmem, size = 0x12000, scoped, tag = 'internal scratch']
  %s0 = inlined_call_operand.hbm [shape: f32[8,256], index: 0, kind: input, shape index: {}]
  %s1 = inlined_call_operand.vmem [shape: f32[8,1], index: 1, kind: input, shape index: {}]
  %s2 = inlined_call_operand.hbm [shape: f32[8,256], index: 2, kind: output, shape index: {}]
  %s3 = sld [smem:[#allocation0]]
  $region22: #{tpu_custom_call.1} parent=0
    _
  %s5 = ssub.s32 1, %s3
  %s6 = scalar_select 0, %s5, %s3
  $region1: #{tpu_custom_call.1} parent=0
    #allocation2 [shape = 'u8[8192]{0}', space=vmem, size = 0x2000, scoped, tag = 'input window, operand 0, single buffered']
    #allocation3 [shape = 's32[1]{0}', space=sflag, size = 0x4, scoped, tag = 'scoped memory for tpu_custom_call.1']
    #allocation4 [shape = 's32[1]{0}', space=sflag, size = 0x4, scoped, tag = 'scoped memory for tpu_custom_call.1']
    #allocation5 [shape = 'u8[8192]{0}', space=vmem, size = 0x2000, scoped, tag = 'output window, operand 0, single buffered']
    %7 = vsyncpa [#allocation3], 0
    %8 = vsyncpa [#allocation4], 0
    // Predicated region
    $region2: #{tpu_custom_call.1} parent=1 // pred_check
      _
    $region3: #{tpu_custom_call.1} parent=1 // pred_check_branch
      %10 = sbr.rel (0) target = $region5
    $region4: #{tpu_custom_call.1} parent=1 // pred_region
      %s12 = ssub.s32 256, 256
      %13 = vsyncadd [#allocation3], %s12
      %s15 = sshll.u32 [#allocation2], 4
      %s16 = int_to_ptr.vmem [resolvable:$true] %s15
      %18 = dma.hbm_to_vmem [thread:$0]  %s0, 256, %s16, [#allocation3]
    $region5: #{tpu_custom_call.1} parent=1 // pred_fallthru
      _
    // Predicated region
    $region6: #{tpu_custom_call.1} parent=1 // pred_check
      _
    $region7: #{tpu_custom_call.1} parent=1 // pred_check_branch
      %20 = sbr.rel (0) target = $region9
    $region8: #{tpu_custom_call.1} parent=1 // pred_region
      _
    $region9: #{tpu_custom_call.1} parent=1 // pred_fallthru
      _
    // Predicated region
    $region10: #{tpu_custom_call.1} parent=1 // pred_check
      _
    $region11: #{tpu_custom_call.1} parent=1 // pred_check_branch
      %22 = sbr.rel (0) target = $region13
    $region12: #{tpu_custom_call.1} parent=1 // pred_region
      %23 = dma.done [#allocation3], 256
    $region13: #{tpu_custom_call.1} parent=1 // pred_fallthru
      _
    %v24 = vld [vmem:[#allocation2] sm:$0xff]
    %v25 = vld [vmem:[#allocation2 + $0x8] sm:$0xff]
    %v26 = vld [vmem:[%s1] sm:$0xff]
    %28 = vset.pattern.permute.xlu0 0
    %29 = vperm.xlu0 %28, %v26
    %v30 = vpop.permute.xlu0 %29
    %v32 = vmul.f32 %v24, %v30
    %v33 = vmul.f32 %v25, %v30
    %34 = vst [vmem:[#allocation5] sm:$0xff] %v32
    %35 = vst [vmem:[#allocation5 + $0x8] sm:$0xff] %v33
    // Predicated region
    $region14: #{tpu_custom_call.1} parent=1 // pred_check
      _
    $region15: #{tpu_custom_call.1} parent=1 // pred_check_branch
      %37 = sbr.rel (0) target = $region17
    $region16: #{tpu_custom_call.1} parent=1 // pred_region
      %s39 = ssub.s32 256, 256
      %40 = vsyncadd [#allocation4], %s39
      %s42 = sshll.u32 [#allocation5], 4
      %s43 = int_to_ptr.vmem [resolvable:$true] %s42
      %45 = dma.vmem_to_hbm [thread:$0]  %s43, 256, %s2, [#allocation4]
    $region17: #{tpu_custom_call.1} parent=1 // pred_fallthru
      _
    // Predicated region
    $region18: #{tpu_custom_call.1} parent=1 // pred_check
      _
    $region19: #{tpu_custom_call.1} parent=1 // pred_check_branch
      %47 = sbr.rel (0) target = $region21
    $region20: #{tpu_custom_call.1} parent=1 // pred_region
      %48 = dma.done [#allocation4], 256
    $region21: #{tpu_custom_call.1} parent=1 // pred_fallthru
      _
    %49 = vsyncpa [#allocation3], 1
    %50 = vsyncpa [#allocation4], 1

</llo_original>
